<compile_context>
chip_gen: v5e
topology: v5e:2x2
jax: 0.10.0
libtpu: 0.0.40
codegen_flags: <defaults>
</compile_context>

<pallas_src>
import functools

import jax
import jax.numpy as jnp
from jax import lax
from jax.experimental import pallas as pl
from jax.experimental.pallas import tpu as pltpu


def _residual_block_kernel(x_ref, w1_ref, w2_ref, b1_ref, b2_ref, mask_ref,
                           out_ref, scr, *, width, pad):
    # x_ref   : (1, C, H*W)       input block (NCHW flattened); also the residual
    # w1_ref  : (C, 9*C)          conv1 weights, BN1 scale folded, (dy, dx, c) order
    # w2_ref  : (C, 9*C)          conv2 weights, BN2 scale folded
    # b1_ref  : (C, 1)            folded BN1 bias
    # b2_ref  : (C, 1)            folded BN2 bias
    # mask_ref: (2, H*W)          row-boundary masks: [0] zero at w==0, [1] zero at w==W-1
    # out_ref : (1, C, H*W)
    # scr     : (C, H*W + 2*pad)  zero-margined flat feature map (persistent VMEM)
    C = x_ref.shape[1]
    HW = x_ref.shape[2]

    # Zero only the lane-aligned margins; the interior is fully overwritten below.
    zmargin = jnp.zeros((C, pad), jnp.float32)
    scr[:, 0:pad] = zmargin
    scr[:, pad + HW:pad + HW + pad] = zmargin

    m_left = mask_ref[0:1, :]     # (1, HW): 0 where w == 0
    m_right = mask_ref[1:2, :]    # (1, HW): 0 where w == W-1

    def conv3x3(w_ref):
        # scr[:, pad:pad+HW] holds the current feature map; margins are zero,
        # so dy = -1 / +1 out-of-image reads land on zeros automatically.
        pieces = []
        for dy in range(3):
            for dx in range(3):
                off = (dy - 1) * width + (dx - 1)
                p = scr[:, pad + off:pad + off + HW]          # lane-shifted read
                if dx == 0:
                    p = p * m_left                            # kill row wrap at w==0
                elif dx == 2:
                    p = p * m_right                           # kill row wrap at w==W-1
                pieces.append(p)
        patches = jnp.concatenate(pieces, axis=0)             # (9*C, HW) im2col
        return jnp.dot(w_ref[...], patches,
                       preferred_element_type=jnp.float32)    # single MXU matmul

    x = x_ref[0]                                              # (C, HW)
    scr[:, pad:pad + HW] = x
    y1 = jnp.maximum(conv3x3(w1_ref) + b1_ref[...], 0.0)      # conv1 + bn1 + relu

    scr[:, pad:pad + HW] = y1
    y2 = conv3x3(w2_ref) + b2_ref[...] + x                    # conv2 + bn2 + residual
    out_ref[0] = jnp.maximum(y2, 0.0)                         # lane-dense store


def residual_block(x_nchw, w1, w2, g1, beta1, m1, v1, g2, beta2, m2, v2,
                   eps=1e-5):
    """x_nchw: (N, C, H, W) float32; w1/w2 in PyTorch (Cout, Cin, 3, 3) layout."""
    N, C, H, W = x_nchw.shape
    assert w1.shape == (C, C, 3, 3) and w2.shape == (C, C, 3, 3), \
        "no-downsample block requires in_channel == out_channel"
    HW = H * W
    pad = pl.cdiv(W + 1, 128) * 128     # lane-aligned zero margin >= W+1

    # Fold inference-mode BatchNorm into conv weights (scale) + bias.
    s1 = g1 / jnp.sqrt(v1 + eps)
    s2 = g2 / jnp.sqrt(v2 + eps)
    b1 = (beta1 - m1 * s1).reshape(C, 1).astype(jnp.float32)
    b2 = (beta2 - m2 * s2).reshape(C, 1).astype(jnp.float32)
    # (Cout, Cin, 3, 3) -> (Cout, (dy, dx, Cin)) matching the kernel's im2col order.
    w1m = (jnp.transpose(w1, (0, 2, 3, 1)).reshape(C, 9 * C)
           * s1[:, None]).astype(jnp.float32)
    w2m = (jnp.transpose(w2, (0, 2, 3, 1)).reshape(C, 9 * C)
           * s2[:, None]).astype(jnp.float32)

    # Row-boundary masks: zero the shifted-read positions that wrap across rows.
    wpos = jnp.arange(HW, dtype=jnp.int32) % W
    mask = jnp.stack([(wpos != 0), (wpos != W - 1)]).astype(jnp.float32)  # (2, HW)

    # Free metadata reshape — no transpose, no padding, single HBM copy of x.
    x_flat = x_nchw.reshape(N, C, HW).astype(jnp.float32)

    kernel = functools.partial(_residual_block_kernel, width=W, pad=pad)
    out_flat = pl.pallas_call(
        kernel,
        out_shape=jax.ShapeDtypeStruct((N, C, HW), jnp.float32),
        grid_spec=pltpu.PrefetchScalarGridSpec(
            num_scalar_prefetch=0,
            grid=(N,),
            in_specs=[
                pl.BlockSpec((1, C, HW), lambda n: (n, 0, 0)),
                pl.BlockSpec((C, 9 * C), lambda n: (0, 0)),
                pl.BlockSpec((C, 9 * C), lambda n: (0, 0)),
                pl.BlockSpec((C, 1), lambda n: (0, 0)),
                pl.BlockSpec((C, 1), lambda n: (0, 0)),
                pl.BlockSpec((2, HW), lambda n: (0, 0)),
            ],
            out_specs=pl.BlockSpec((1, C, HW), lambda n: (n, 0, 0)),
            scratch_shapes=[pltpu.VMEM((C, HW + 2 * pad), jnp.float32)],
        ),
        compiler_params=pltpu.CompilerParams(
            dimension_semantics=("parallel",)),
    )(x_flat, w1m, w2m, b1, b2, mask)

    return out_flat.reshape(N, C, H, W)


def _reference(x_nchw, w1, w2, g1, beta1, m1, v1, g2, beta2, m2, v2, eps=1e-5):
    """Plain-JAX reference mirroring the PyTorch forward (eval-mode BN)."""
    def conv(x, w):
        return lax.conv_general_dilated(
            x, w, window_strides=(1, 1), padding=((1, 1), (1, 1)),
            dimension_numbers=("NCHW", "OIHW", "NCHW"))

    def bn(x, g, b, m, v):
        g, b, m, v = (t.reshape(1, -1, 1, 1) for t in (g, b, m, v))
        return (x - m) / jnp.sqrt(v + eps) * g + b

    out = jnp.maximum(bn(conv(x_nchw, w1), g1, beta1, m1, v1), 0.0)
    out = bn(conv(out, w2), g2, beta2, m2, v2) + x_nchw
    return jnp.maximum(out, 0.0)


if __name__ == "__main__":
    N, C, H, W = 2, 8, 16, 16   # in_channel == out_channel, stride=1, no downsample
    key = jax.random.PRNGKey(0)
    kx, kw1, kw2, kb1, kb2, km1, km2 = jax.random.split(key, 7)

    x = jax.random.normal(kx, (N, C, H, W), jnp.float32)

    # conv weights, PyTorch layout (Cout, Cin, 3, 3), kaiming-ish scale
    fan_in = C * 3 * 3
    w1 = jax.random.normal(kw1, (C, C, 3, 3), jnp.float32) * (2.0 / fan_in) ** 0.5
    w2 = jax.random.normal(kw2, (C, C, 3, 3), jnp.float32) * (2.0 / fan_in) ** 0.5

    # BatchNorm params (deterministic, non-trivial): gamma, beta, running mean/var
    g1 = 1.0 + 0.1 * jax.random.normal(kb1, (C,), jnp.float32)
    beta1 = 0.1 * jax.random.normal(km1, (C,), jnp.float32)
    m1 = 0.05 * jax.random.normal(kb2, (C,), jnp.float32)
    v1 = 1.0 + 0.1 * jnp.abs(jax.random.normal(km2, (C,), jnp.float32))
    g2 = 1.0 - 0.05 * jnp.arange(C, dtype=jnp.float32) / C
    beta2 = 0.02 * jnp.arange(C, dtype=jnp.float32)
    m2 = -0.03 * jnp.ones((C,), jnp.float32)
    v2 = 1.0 + 0.2 * jnp.arange(C, dtype=jnp.float32) / C

    out = residual_block(x, w1, w2, g1, beta1, m1, v1, g2, beta2, m2, v2)
    out = jax.block_until_ready(out)

    ref = _reference(x, w1, w2, g1, beta1, m1, v1, g2, beta2, m2, v2)
    assert out.shape == (N, C, H, W)
    assert jnp.max(jnp.abs(out - ref)) < 2e-4, "Pallas kernel mismatch vs reference"

    print("KERNEL_OK")
</pallas_src>

<mosaic_0001>
module attributes {stable_mosaic.version = 11 : i64} {
  func.func @_residual_block_kernel(%arg0: i32, %arg1: memref<1x8x256xf32, #tpu.memory_space<vmem>>, %arg2: memref<8x72xf32, #tpu.memory_space<vmem>>, %arg3: memref<8x72xf32, #tpu.memory_space<vmem>>, %arg4: memref<8x1xf32, #tpu.memory_space<vmem>>, %arg5: memref<8x1xf32, #tpu.memory_space<vmem>>, %arg6: memref<2x256xf32, #tpu.memory_space<vmem>>, %arg7: memref<1x8x256xf32, #tpu.memory_space<vmem>>, %arg8: memref<8x512xf32, #tpu.memory_space<vmem>>) attributes {dimension_semantics = [#tpu.dimension_semantics<parallel>], iteration_bounds = array<i64: 2>, scalar_prefetch = 0 : i64, scratch_operands = 1 : i64, tpu.core_type = #tpu.core_type<tc>, window_params = [{transform_indices = @transform_0, window_bounds = array<i64: 1, 8, 256>}, {pipeline_mode = #tpu.pipeline_mode<synchronous>, transform_indices = @transform_1, window_bounds = array<i64: 8, 72>}, {pipeline_mode = #tpu.pipeline_mode<synchronous>, transform_indices = @transform_2, window_bounds = array<i64: 8, 72>}, {pipeline_mode = #tpu.pipeline_mode<synchronous>, transform_indices = @transform_3, window_bounds = array<i64: 8, 1>}, {pipeline_mode = #tpu.pipeline_mode<synchronous>, transform_indices = @transform_4, window_bounds = array<i64: 8, 1>}, {pipeline_mode = #tpu.pipeline_mode<synchronous>, transform_indices = @transform_5, window_bounds = array<i64: 2, 256>}, {transform_indices = @transform_6, window_bounds = array<i64: 1, 8, 256>}]} {
    %cst = arith.constant 0.000000e+00 : f32
    %0 = vector.broadcast %cst : f32 to vector<8x128xf32>
    %c0 = arith.constant 0 : index
    %c0_0 = arith.constant 0 : index
    %1 = vector.load %arg8[%c0, %c0_0] : memref<8x512xf32, #tpu.memory_space<vmem>>, vector<8x128xf32>
    tpu.vector_store %arg8[%c0, %c0_0], %0 {strides = array<i32>} : memref<8x512xf32, #tpu.memory_space<vmem>>, vector<8x128xf32>,
    %c0_1 = arith.constant 0 : index
    %c384 = arith.constant 384 : index
    %2 = vector.load %arg8[%c0_1, %c384] : memref<8x512xf32, #tpu.memory_space<vmem>>, vector<8x128xf32>
    tpu.vector_store %arg8[%c0_1, %c384], %0 {strides = array<i32>} : memref<8x512xf32, #tpu.memory_space<vmem>>, vector<8x128xf32>,
    %c0_2 = arith.constant 0 : index
    %c0_3 = arith.constant 0 : index
    %3 = vector.load %arg6[%c0_2, %c0_3] : memref<2x256xf32, #tpu.memory_space<vmem>>, vector<1x256xf32>
    %c1 = arith.constant 1 : index
    %c0_4 = arith.constant 0 : index
    %4 = vector.load %arg6[%c1, %c0_4] : memref<2x256xf32, #tpu.memory_space<vmem>>, vector<1x256xf32>
    %c0_5 = arith.constant 0 : index
    %c0_6 = arith.constant 0 : index
    %c0_7 = arith.constant 0 : index
    %5 = vector.load %arg1[%c0_5, %c0_6, %c0_7] : memref<1x8x256xf32, #tpu.memory_space<vmem>>, vector<1x8x256xf32>
    %6 = vector.shape_cast %5 : vector<1x8x256xf32> to vector<8x256xf32>
    %c0_8 = arith.constant 0 : index
    %c128 = arith.constant 128 : index
    %7 = vector.load %arg8[%c0_8, %c128] : memref<8x512xf32, #tpu.memory_space<vmem>>, vector<8x256xf32>
    tpu.vector_store %arg8[%c0_8, %c128], %6 {strides = array<i32>} : memref<8x512xf32, #tpu.memory_space<vmem>>, vector<8x256xf32>,
    %c0_9 = arith.constant 0 : index
    %c111 = arith.constant 111 : index
    %8 = vector.load %arg8[%c0_9, %c111] : memref<8x512xf32, #tpu.memory_space<vmem>>, vector<8x256xf32>
    %9 = vector.broadcast %3 : vector<1x256xf32> to vector<8x256xf32>
    %10 = arith.mulf %8, %9 : vector<8x256xf32>
    %c0_10 = arith.constant 0 : index
    %c112 = arith.constant 112 : index
    %11 = vector.load %arg8[%c0_10, %c112] : memref<8x512xf32, #tpu.memory_space<vmem>>, vector<8x256xf32>
    %c0_11 = arith.constant 0 : index
    %c113 = arith.constant 113 : index
    %12 = vector.load %arg8[%c0_11, %c113] : memref<8x512xf32, #tpu.memory_space<vmem>>, vector<8x256xf32>
    %13 = vector.broadcast %4 : vector<1x256xf32> to vector<8x256xf32>
    %14 = arith.mulf %12, %13 : vector<8x256xf32>
    %c0_12 = arith.constant 0 : index
    %c127 = arith.constant 127 : index
    %15 = vector.load %arg8[%c0_12, %c127] : memref<8x512xf32, #tpu.memory_space<vmem>>, vector<8x256xf32>
    %16 = vector.broadcast %3 : vector<1x256xf32> to vector<8x256xf32>
    %17 = arith.mulf %15, %16 : vector<8x256xf32>
    %c0_13 = arith.constant 0 : index
    %c128_14 = arith.constant 128 : index
    %18 = vector.load %arg8[%c0_13, %c128_14] : memref<8x512xf32, #tpu.memory_space<vmem>>, vector<8x256xf32>
    %c0_15 = arith.constant 0 : index
    %c129 = arith.constant 129 : index
    %19 = vector.load %arg8[%c0_15, %c129] : memref<8x512xf32, #tpu.memory_space<vmem>>, vector<8x256xf32>
    %20 = vector.broadcast %4 : vector<1x256xf32> to vector<8x256xf32>
    %21 = arith.mulf %19, %20 : vector<8x256xf32>
    %c0_16 = arith.constant 0 : index
    %c143 = arith.constant 143 : index
    %22 = vector.load %arg8[%c0_16, %c143] : memref<8x512xf32, #tpu.memory_space<vmem>>, vector<8x256xf32>
    %23 = vector.broadcast %3 : vector<1x256xf32> to vector<8x256xf32>
    %24 = arith.mulf %22, %23 : vector<8x256xf32>
    %c0_17 = arith.constant 0 : index
    %c144 = arith.constant 144 : index
    %25 = vector.load %arg8[%c0_17, %c144] : memref<8x512xf32, #tpu.memory_space<vmem>>, vector<8x256xf32>
    %c0_18 = arith.constant 0 : index
    %c145 = arith.constant 145 : index
    %26 = vector.load %arg8[%c0_18, %c145] : memref<8x512xf32, #tpu.memory_space<vmem>>, vector<8x256xf32>
    %27 = vector.broadcast %4 : vector<1x256xf32> to vector<8x256xf32>
    %28 = arith.mulf %26, %27 : vector<8x256xf32>
    %29 = tpu.concatenate %10, %11, %14, %17, %18, %21, %24, %25, %28 in 0 : vector<8x256xf32>, vector<8x256xf32>, vector<8x256xf32>, vector<8x256xf32>, vector<8x256xf32>, vector<8x256xf32>, vector<8x256xf32>, vector<8x256xf32>, vector<8x256xf32> -> vector<72x256xf32>
    %c0_19 = arith.constant 0 : index
    %c0_20 = arith.constant 0 : index
    %30 = vector.load %arg2[%c0_19, %c0_20] : memref<8x72xf32, #tpu.memory_space<vmem>>, vector<8x72xf32>
    %cst_21 = arith.constant dense<0.000000e+00> : vector<8x256xf32>
    %31 = tpu.matmul %30, %29, %cst_21 {dimension_numbers = #tpu.dot_dimension_numbers<[1], [0], [0], [1], [0, 0, 1, 1], [], []>} : vector<8x72xf32>, vector<72x256xf32>, vector<8x256xf32> -> vector<8x256xf32>
    %c0_22 = arith.constant 0 : index
    %c0_23 = arith.constant 0 : index
    %32 = vector.load %arg4[%c0_22, %c0_23] : memref<8x1xf32, #tpu.memory_space<vmem>>, vector<8x1xf32>
    %33 = vector.broadcast %32 : vector<8x1xf32> to vector<8x256xf32>
    %34 = arith.addf %31, %33 : vector<8x256xf32>
    %cst_24 = arith.constant 0.000000e+00 : f32
    %35 = vector.broadcast %cst_24 : f32 to vector<8x256xf32>
    %36 = arith.maximumf %34, %35 : vector<8x256xf32>
    %c0_25 = arith.constant 0 : index
    %c128_26 = arith.constant 128 : index
    %37 = vector.load %arg8[%c0_25, %c128_26] : memref<8x512xf32, #tpu.memory_space<vmem>>, vector<8x256xf32>
    tpu.vector_store %arg8[%c0_25, %c128_26], %36 {strides = array<i32>} : memref<8x512xf32, #tpu.memory_space<vmem>>, vector<8x256xf32>,
    %c0_27 = arith.constant 0 : index
    %c111_28 = arith.constant 111 : index
    %38 = vector.load %arg8[%c0_27, %c111_28] : memref<8x512xf32, #tpu.memory_space<vmem>>, vector<8x256xf32>
    %39 = vector.broadcast %3 : vector<1x256xf32> to vector<8x256xf32>
    %40 = arith.mulf %38, %39 : vector<8x256xf32>
    %c0_29 = arith.constant 0 : index
    %c112_30 = arith.constant 112 : index
    %41 = vector.load %arg8[%c0_29, %c112_30] : memref<8x512xf32, #tpu.memory_space<vmem>>, vector<8x256xf32>
    %c0_31 = arith.constant 0 : index
    %c113_32 = arith.constant 113 : index
    %42 = vector.load %arg8[%c0_31, %c113_32] : memref<8x512xf32, #tpu.memory_space<vmem>>, vector<8x256xf32>
    %43 = vector.broadcast %4 : vector<1x256xf32> to vector<8x256xf32>
    %44 = arith.mulf %42, %43 : vector<8x256xf32>
    %c0_33 = arith.constant 0 : index
    %c127_34 = arith.constant 127 : index
    %45 = vector.load %arg8[%c0_33, %c127_34] : memref<8x512xf32, #tpu.memory_space<vmem>>, vector<8x256xf32>
    %46 = vector.broadcast %3 : vector<1x256xf32> to vector<8x256xf32>
    %47 = arith.mulf %45, %46 : vector<8x256xf32>
    %c0_35 = arith.constant 0 : index
    %c128_36 = arith.constant 128 : index
    %48 = vector.load %arg8[%c0_35, %c128_36] : memref<8x512xf32, #tpu.memory_space<vmem>>, vector<8x256xf32>
    %c0_37 = arith.constant 0 : index
    %c129_38 = arith.constant 129 : index
    %49 = vector.load %arg8[%c0_37, %c129_38] : memref<8x512xf32, #tpu.memory_space<vmem>>, vector<8x256xf32>
    %50 = vector.broadcast %4 : vector<1x256xf32> to vector<8x256xf32>
    %51 = arith.mulf %49, %50 : vector<8x256xf32>
    %c0_39 = arith.constant 0 : index
    %c143_40 = arith.constant 143 : index
    %52 = vector.load %arg8[%c0_39, %c143_40] : memref<8x512xf32, #tpu.memory_space<vmem>>, vector<8x256xf32>
    %53 = vector.broadcast %3 : vector<1x256xf32> to vector<8x256xf32>
    %54 = arith.mulf %52, %53 : vector<8x256xf32>
    %c0_41 = arith.constant 0 : index
    %c144_42 = arith.constant 144 : index
    %55 = vector.load %arg8[%c0_41, %c144_42] : memref<8x512xf32, #tpu.memory_space<vmem>>, vector<8x256xf32>
    %c0_43 = arith.constant 0 : index
    %c145_44 = arith.constant 145 : index
    %56 = vector.load %arg8[%c0_43, %c145_44] : memref<8x512xf32, #tpu.memory_space<vmem>>, vector<8x256xf32>
    %57 = vector.broadcast %4 : vector<1x256xf32> to vector<8x256xf32>
    %58 = arith.mulf %56, %57 : vector<8x256xf32>
    %59 = tpu.concatenate %40, %41, %44, %47, %48, %51, %54, %55, %58 in 0 : vector<8x256xf32>, vector<8x256xf32>, vector<8x256xf32>, vector<8x256xf32>, vector<8x256xf32>, vector<8x256xf32>, vector<8x256xf32>, vector<8x256xf32>, vector<8x256xf32> -> vector<72x256xf32>
    %c0_45 = arith.constant 0 : index
    %c0_46 = arith.constant 0 : index
    %60 = vector.load %arg3[%c0_45, %c0_46] : memref<8x72xf32, #tpu.memory_space<vmem>>, vector<8x72xf32>
    %cst_47 = arith.constant dense<0.000000e+00> : vector<8x256xf32>
    %61 = tpu.matmul %60, %59, %cst_47 {dimension_numbers = #tpu.dot_dimension_numbers<[1], [0], [0], [1], [0, 0, 1, 1], [], []>} : vector<8x72xf32>, vector<72x256xf32>, vector<8x256xf32> -> vector<8x256xf32>
    %c0_48 = arith.constant 0 : index
    %c0_49 = arith.constant 0 : index
    %62 = vector.load %arg5[%c0_48, %c0_49] : memref<8x1xf32, #tpu.memory_space<vmem>>, vector<8x1xf32>
    %63 = vector.broadcast %62 : vector<8x1xf32> to vector<8x256xf32>
    %64 = arith.addf %61, %63 : vector<8x256xf32>
    %65 = arith.addf %64, %6 : vector<8x256xf32>
    %cst_50 = arith.constant 0.000000e+00 : f32
    %66 = vector.broadcast %cst_50 : f32 to vector<8x256xf32>
    %67 = arith.maximumf %65, %66 : vector<8x256xf32>
    %c0_51 = arith.constant 0 : index
    %c0_52 = arith.constant 0 : index
    %c0_53 = arith.constant 0 : index
    %68 = vector.load %arg7[%c0_51, %c0_52, %c0_53] : memref<1x8x256xf32, #tpu.memory_space<vmem>>, vector<1x8x256xf32>
    %69 = vector.shape_cast %68 : vector<1x8x256xf32> to vector<8x256xf32>
    %70 = vector.shape_cast %67 : vector<8x256xf32> to vector<1x8x256xf32>
    tpu.vector_store %arg7[%c0_51, %c0_52, %c0_53], %70 {strides = array<i32>} : memref<1x8x256xf32, #tpu.memory_space<vmem>>, vector<1x8x256xf32>,
    return
  }
  func.func @transform_0(%arg0: i32) -> (i32, i32, i32) {
    %c0_i32 = arith.constant 0 : i32
    %c0_i32_0 = arith.constant 0 : i32
    %c0_i32_1 = arith.constant 0 : i32
    return %arg0, %c0_i32, %c0_i32_0 : i32, i32, i32
  }
  func.func @transform_1(%arg0: i32) -> (i32, i32) {
    %c0_i32 = arith.constant 0 : i32
    %c0_i32_0 = arith.constant 0 : i32
    %c0_i32_1 = arith.constant 0 : i32
    return %c0_i32, %c0_i32_0 : i32, i32
  }
  func.func @transform_2(%arg0: i32) -> (i32, i32) {
    %c0_i32 = arith.constant 0 : i32
    %c0_i32_0 = arith.constant 0 : i32
    %c0_i32_1 = arith.constant 0 : i32
    return %c0_i32, %c0_i32_0 : i32, i32
  }
  func.func @transform_3(%arg0: i32) -> (i32, i32) {
    %c0_i32 = arith.constant 0 : i32
    %c0_i32_0 = arith.constant 0 : i32
    %c0_i32_1 = arith.constant 0 : i32
    return %c0_i32, %c0_i32_0 : i32, i32
  }
  func.func @transform_4(%arg0: i32) -> (i32, i32) {
    %c0_i32 = arith.constant 0 : i32
    %c0_i32_0 = arith.constant 0 : i32
    %c0_i32_1 = arith.constant 0 : i32
    return %c0_i32, %c0_i32_0 : i32, i32
  }
  func.func @transform_5(%arg0: i32) -> (i32, i32) {
    %c0_i32 = arith.constant 0 : i32
    %c0_i32_0 = arith.constant 0 : i32
    %c0_i32_1 = arith.constant 0 : i32
    return %c0_i32, %c0_i32_0 : i32, i32
  }
  func.func @transform_6(%arg0: i32) -> (i32, i32, i32) {
    %c0_i32 = arith.constant 0 : i32
    %c0_i32_0 = arith.constant 0 : i32
    %c0_i32_1 = arith.constant 0 : i32
    return %arg0, %c0_i32, %c0_i32_0 : i32, i32, i32
  }
}

</mosaic_0001>

<llo_original>
// kernel: tpu_custom_call.1
$region0: #{tpu_custom_call.1}
  #allocation0 [shape = 'u32[]', space=smem, size = 0x4, offset = 0x4, fixed_abs, tag = 'smem constant byte address 0x4 - core index']
  #allocation1 [shape = 'u32[72,128]{1,0:T(1,128)}', space=vmem, size = 0x9000, scoped, tag = 'internal scratch']
  #allocation2 [shape = 'f32[8,512]{1,0:T(8,128)}', space=vmem, size = 0x4000, scoped, tag = 'scratch operand']
  %s0 = inlined_call_operand.hbm [shape: f32[2,8,256], index: 0, kind: input, shape index: {}]
  %s1 = inlined_call_operand.vmem [shape: f32[8,72], index: 1, kind: input, shape index: {}]
  %s2 = inlined_call_operand.vmem [shape: f32[8,72], index: 2, kind: input, shape index: {}]
  %s3 = inlined_call_operand.vmem [shape: f32[8,1], index: 3, kind: input, shape index: {}]
  %s4 = inlined_call_operand.vmem [shape: f32[8,1], index: 4, kind: input, shape index: {}]
  %s5 = inlined_call_operand.hbm [shape: f32[2,256], index: 5, kind: input, shape index: {}]
  %s6 = inlined_call_operand.hbm [shape: f32[2,8,256], index: 6, kind: output, shape index: {}]
  %s7 = sld [smem:[#allocation0]]
  $region65: #{tpu_custom_call.1} parent=0
    _
  %s9 = ssub.s32 1, %s7
  %s10 = scalar_select 0, %s9, %s7
  $region1: #{tpu_custom_call.1} parent=0
    #allocation3 [shape = 'u8[16384]{0}', space=vmem, size = 0x4000, scoped, tag = 'input window, operand 0']
    #allocation4 [shape = 's32[2]{0}', space=sflag, size = 0x8, scoped, tag = 'scoped memory for tpu_custom_call.1']
    #allocation5 [shape = 's32[2]{0}', space=sflag, size = 0x8, scoped, tag = 'scoped memory for tpu_custom_call.1']
    #allocation6 [shape = 'u8[2048]{0}', space=vmem, size = 0x800, scoped, tag = 'input window, operand 5, single buffered']
    #allocation7 [shape = 's32[1]{0}', space=sflag, size = 0x4, scoped, tag = 'scoped memory for tpu_custom_call.1']
    #allocation8 [shape = 'u8[16384]{0}', space=vmem, size = 0x4000, scoped, tag = 'output window, operand 0']
    %11 = vsyncpa [#allocation4], 0
    %s12 = scalar_lea.sflag [#allocation4], 1
    %13 = vsyncpa %s12, 0
    %14 = vsyncpa [#allocation7], 0
    %15 = vsyncpa [#allocation5], 0
    %s16 = scalar_lea.sflag [#allocation5], 1
    %17 = vsyncpa %s16, 0
    loop: start=0, step=1, limit=4
    $region2: #{tpu_custom_call.1} parent=1 // loop_pre_header
      _
    $region3: #{tpu_custom_call.1} parent=1 // loop_header
      %s19 = sphi 0, %s23
      %p20 = scmp.ge.s32.totalorder %s19, 4
      %s29 = sphi 0, %s31
      %s32 = sphi 0, %s29
      %s33 = sphi 0, %s32
      %s49 = sphi 0, %s33
      %s53 = sphi 0, %s53
      %s55 = sphi 0, %s53
      %s56 = sphi 0, %s55
      %s70 = sphi 0, %s56
      %s74 = sphi 0, %s74
      %s76 = sphi 0, %s74
      %s77 = sphi 0, %s76
      %s91 = sphi 0, %s77
      %s95 = sphi 0, %s95
      %s97 = sphi 0, %s95
      %s98 = sphi 0, %s97
      %s112 = sphi 0, %s98
      %s116 = sphi 0, %s116
      %s118 = sphi 0, %s116
      %s119 = sphi 0, %s118
      %s133 = sphi 0, %s119
      %s137 = sphi 0, %s137
      %s139 = sphi 0, %s137
      %s140 = sphi 0, %s139
      %s154 = sphi 0, %s140
      %s160 = sphi 0, %s162
      %s163 = sphi 0, %s160
      %s164 = sphi 0, %s163
      %s180 = sphi 0, %s164
    $region4: #{tpu_custom_call.1} parent=1 // loop_header_branch
      %22 = sbr.rel (%p20) target = $region8
    $region5: #{tpu_custom_call.1} parent=1 // loop_body
      %s24 = ssub.s32 %s19, 1
      %s25 = ssub.s32 %s19, 2
      %s26 = sadd.s32 %s19, 1
      %s27 = ssub.s32 %s19, %s26
      %p28 = scmp.eq.s32.totalorder %s27, 0
      %s30 = sadd.s32 %s29, 1
      %s31 = scalar_select %p28, %s29, %s30
      %p34 = pneg %p28
      %p35 = scmp.eq.s32.totalorder %s19, 1
      %p36 = por %p34, %p35
      %p37 = scmp.ne.s32.totalorder %s29, %s32
      %p38 = scmp.eq.s32.totalorder %s19, 0
      %p39 = por %p37, %p38
      %p40 = scmp.ne.s32.totalorder %s29, %s32
      %p41 = scmp.eq.s32.totalorder %s24, 1
      %p42 = por %p40, %p41
      %p43 = scmp.ne.s32.totalorder %s32, %s33
      %p44 = scmp.eq.s32.totalorder %s24, 0
      %p45 = por %p43, %p44
      %p46 = scmp.ne.s32.totalorder %s32, %s33
      %p47 = scmp.eq.s32.totalorder %s25, 1
      %p48 = por %p46, %p47
      %p50 = scmp.ne.s32.totalorder %s33, %s49
      %p51 = scmp.eq.s32.totalorder %s25, 0
      %p52 = por %p50, %p51
      %s54 = sadd.s32 %s53, 1
      %p57 = scmp.eq.s32.totalorder %s19, 1
      %p58 = scmp.ne.s32.totalorder %s53, %s55
      %p59 = scmp.eq.s32.totalorder %s19, 0
      %p60 = por %p58, %p59
      %p61 = scmp.ne.s32.totalorder %s53, %s55
      %p62 = scmp.eq.s32.totalorder %s24, 1
      %p63 = por %p61, %p62
      %p64 = scmp.ne.s32.totalorder %s55, %s56
      %p65 = scmp.eq.s32.totalorder %s24, 0
      %p66 = por %p64, %p65
      %p67 = scmp.ne.s32.totalorder %s55, %s56
      %p68 = scmp.eq.s32.totalorder %s25, 1
      %p69 = por %p67, %p68
      %p71 = scmp.ne.s32.totalorder %s56, %s70
      %p72 = scmp.eq.s32.totalorder %s25, 0
      %p73 = por %p71, %p72
      %s75 = sadd.s32 %s74, 1
      %p78 = scmp.eq.s32.totalorder %s19, 1
      %p79 = scmp.ne.s32.totalorder %s74, %s76
      %p80 = scmp.eq.s32.totalorder %s19, 0
      %p81 = por %p79, %p80
      %p82 = scmp.ne.s32.totalorder %s74, %s76
      %p83 = scmp.eq.s32.totalorder %s24, 1
      %p84 = por %p82, %p83
      %p85 = scmp.ne.s32.totalorder %s76, %s77
      %p86 = scmp.eq.s32.totalorder %s24, 0
      %p87 = por %p85, %p86
      %p88 = scmp.ne.s32.totalorder %s76, %s77
      %p89 = scmp.eq.s32.totalorder %s25, 1
      %p90 = por %p88, %p89
      %p92 = scmp.ne.s32.totalorder %s77, %s91
      %p93 = scmp.eq.s32.totalorder %s25, 0
      %p94 = por %p92, %p93
      %s96 = sadd.s32 %s95, 1
      %p99 = scmp.eq.s32.totalorder %s19, 1
      %p100 = scmp.ne.s32.totalorder %s95, %s97
      %p101 = scmp.eq.s32.totalorder %s19, 0
      %p102 = por %p100, %p101
      %p103 = scmp.ne.s32.totalorder %s95, %s97
      %p104 = scmp.eq.s32.totalorder %s24, 1
      %p105 = por %p103, %p104
      %p106 = scmp.ne.s32.totalorder %s97, %s98
      %p107 = scmp.eq.s32.totalorder %s24, 0
      %p108 = por %p106, %p107
      %p109 = scmp.ne.s32.totalorder %s97, %s98
      %p110 = scmp.eq.s32.totalorder %s25, 1
      %p111 = por %p109, %p110
      %p113 = scmp.ne.s32.totalorder %s98, %s112
      %p114 = scmp.eq.s32.totalorder %s25, 0
      %p115 = por %p113, %p114
      %s117 = sadd.s32 %s116, 1
      %p120 = scmp.eq.s32.totalorder %s19, 1
      %p121 = scmp.ne.s32.totalorder %s116, %s118
      %p122 = scmp.eq.s32.totalorder %s19, 0
      %p123 = por %p121, %p122
      %p124 = scmp.ne.s32.totalorder %s116, %s118
      %p125 = scmp.eq.s32.totalorder %s24, 1
      %p126 = por %p124, %p125
      %p127 = scmp.ne.s32.totalorder %s118, %s119
      %p128 = scmp.eq.s32.totalorder %s24, 0
      %p129 = por %p127, %p128
      %p130 = scmp.ne.s32.totalorder %s118, %s119
      %p131 = scmp.eq.s32.totalorder %s25, 1
      %p132 = por %p130, %p131
      %p134 = scmp.ne.s32.totalorder %s119, %s133
      %p135 = scmp.eq.s32.totalorder %s25, 0
      %p136 = por %p134, %p135
      %s138 = sadd.s32 %s137, 1
      %p141 = scmp.eq.s32.totalorder %s19, 1
      %p142 = scmp.ne.s32.totalorder %s137, %s139
      %p143 = scmp.eq.s32.totalorder %s19, 0
      %p144 = por %p142, %p143
      %p145 = scmp.ne.s32.totalorder %s137, %s139
      %p146 = scmp.eq.s32.totalorder %s24, 1
      %p147 = por %p145, %p146
      %p148 = scmp.ne.s32.totalorder %s139, %s140
      %p149 = scmp.eq.s32.totalorder %s24, 0
      %p150 = por %p148, %p149
      %p151 = scmp.ne.s32.totalorder %s139, %s140
      %p152 = scmp.eq.s32.totalorder %s25, 1
      %p153 = por %p151, %p152
      %p155 = scmp.ne.s32.totalorder %s140, %s154
      %p156 = scmp.eq.s32.totalorder %s25, 0
      %p157 = por %p155, %p156
      %s158 = ssub.s32 %s19, %s26
      %p159 = scmp.eq.s32.totalorder %s158, 0
      %s161 = sadd.s32 %s160, 1
      %s162 = scalar_select %p159, %s160, %s161
      %p165 = pneg %p159
      %p166 = scmp.eq.s32.totalorder %s19, 1
      %p167 = por %p165, %p166
      %p168 = scmp.ne.s32.totalorder %s160, %s163
      %p169 = scmp.eq.s32.totalorder %s19, 0
      %p170 = por %p168, %p169
      %p171 = scmp.ne.s32.totalorder %s160, %s163
      %p172 = scmp.eq.s32.totalorder %s24, 1
      %p173 = por %p171, %p172
      %p174 = scmp.ne.s32.totalorder %s163, %s164
      %p175 = scmp.eq.s32.totalorder %s24, 0
      %p176 = por %p174, %p175
      %p177 = scmp.ne.s32.totalorder %s163, %s164
      %p178 = scmp.eq.s32.totalorder %s25, 1
      %p179 = por %p177, %p178
      %p181 = scmp.ne.s32.totalorder %s164, %s180
      %p182 = scmp.eq.s32.totalorder %s25, 0
      %p183 = por %p181, %p182
      %p184 = scmp.le.s32.totalorder 1, %s19
      %p185 = scmp.lt.s32.totalorder %s19, 3
      %p186 = pnand %p184, %p185
      %p187 = pneg %p186
      // Predicated region
      $region9: #{tpu_custom_call.1} parent=5 // pred_check
        _
      $region10: #{tpu_custom_call.1} parent=5 // pred_check_branch
        %189 = sbr.rel (%p186) target = $region12
      $region11: #{tpu_custom_call.1} parent=5 // pred_region
        %s190 = ssub.s32 %s19, 1
        // Predicated region
        $region13: #{tpu_custom_call.1} parent=11 // pred_check
          %p191 = pneg %p66
        $region14: #{tpu_custom_call.1} parent=11 // pred_check_branch
          %193 = sbr.rel (%p191) target = $region16
        $region15: #{tpu_custom_call.1} parent=11 // pred_region
          _
        $region16: #{tpu_custom_call.1} parent=11 // pred_fallthru
          _
        // Predicated region
        $region17: #{tpu_custom_call.1} parent=11 // pred_check
          %p194 = pneg %p87
        $region18: #{tpu_custom_call.1} parent=11 // pred_check_branch
          %196 = sbr.rel (%p194) target = $region20
        $region19: #{tpu_custom_call.1} parent=11 // pred_region
          _
        $region20: #{tpu_custom_call.1} parent=11 // pred_fallthru
          _
        // Predicated region
        $region21: #{tpu_custom_call.1} parent=11 // pred_check
          %p197 = pneg %p108
        $region22: #{tpu_custom_call.1} parent=11 // pred_check_branch
          %199 = sbr.rel (%p197) target = $region24
        $region23: #{tpu_custom_call.1} parent=11 // pred_region
          _
        $region24: #{tpu_custom_call.1} parent=11 // pred_fallthru
          _
        // Predicated region
        $region25: #{tpu_custom_call.1} parent=11 // pred_check
          %p200 = pneg %p129
        $region26: #{tpu_custom_call.1} parent=11 // pred_check_branch
          %202 = sbr.rel (%p200) target = $region28
        $region27: #{tpu_custom_call.1} parent=11 // pred_region
          _
        $region28: #{tpu_custom_call.1} parent=11 // pred_fallthru
          _
        // Predicated region
        $region29: #{tpu_custom_call.1} parent=11 // pred_check
          %p203 = pneg %p150
        $region30: #{tpu_custom_call.1} parent=11 // pred_check_branch
          %205 = sbr.rel (%p203) target = $region32
        $region31: #{tpu_custom_call.1} parent=11 // pred_region
          %207 = vsyncadd [#allocation7], 0
          %s209 = sshll.u32 %s5, 4
          %s210 = int_to_ptr.hbm [resolvable:$true] %s209
          %s211 = sshll.u32 [#allocation6], 4
          %s212 = int_to_ptr.vmem [resolvable:$true] %s211
          %214 = dma.hbm_to_vmem [thread:$0]  %s210, 64, %s212, [#allocation7]
        $region32: #{tpu_custom_call.1} parent=11 // pred_fallthru
          _
      $region12: #{tpu_custom_call.1} parent=5 // pred_fallthru
        _
      %p215 = scmp.lt.s32.totalorder %s19, 2
      // Predicated region
      $region33: #{tpu_custom_call.1} parent=5 // pred_check
        %p216 = pneg %p215
      $region34: #{tpu_custom_call.1} parent=5 // pred_check_branch
        %218 = sbr.rel (%p216) target = $region36
      $region35: #{tpu_custom_call.1} parent=5 // pred_region
        // Predicated region
        $region37: #{tpu_custom_call.1} parent=35 // pred_check
          %p219 = pneg %p39
        $region38: #{tpu_custom_call.1} parent=35 // pred_check_branch
          %221 = sbr.rel (%p219) target = $region40
        $region39: #{tpu_custom_call.1} parent=35 // pred_region
          %s222 = sand.u32 %s29, 1
          %s223 = scalar_lea.sflag [#allocation4], %s222
          %s224 = sand.u32 %s29, 1
          %s225 = smul.addr %s224, 16
          %s226 = scalar_lea.vmem [#allocation3], %s225
          %228 = vsyncadd %s223, 0
          %s229 = smul.addr %s19, 2
          %s230 = smul.addr %s229, 8
          %s231 = scalar_lea.hbm %s0, %s230
          %s233 = sshll.u32 %s231, 4
          %s234 = int_to_ptr.hbm [resolvable:$true] %s233
          %s235 = sshll.u32 %s226, 4
          %s236 = int_to_ptr.vmem [resolvable:$true] %s235
          %238 = dma.hbm_to_vmem [thread:$0]  %s234, 256, %s236, %s223
        $region40: #{tpu_custom_call.1} parent=35 // pred_fallthru
          _
      $region36: #{tpu_custom_call.1} parent=5 // pred_fallthru
        _
      %p239 = scmp.le.s32.totalorder 1, %s19
      %p240 = scmp.lt.s32.totalorder %s19, 3
      %p241 = pnand %p239, %p240
      %p242 = pneg %p241
      // Predicated region
      $region41: #{tpu_custom_call.1} parent=5 // pred_check
        _
      $region42: #{tpu_custom_call.1} parent=5 // pred_check_branch
        %244 = sbr.rel (%p241) target = $region44
      $region43: #{tpu_custom_call.1} parent=5 // pred_region
        %s245 = ssub.s32 %s19, 1
        %s246 = sand.u32 %s32, 1
        %s247 = scalar_lea.sflag [#allocation4], %s246
        %s248 = sand.u32 %s32, 1
        %s249 = smul.addr %s248, 16
        %s250 = scalar_lea.vmem [#allocation3], %s249
        // Predicated region
        $region45: #{tpu_custom_call.1} parent=43 // pred_check
          %p251 = pneg %p45
        $region46: #{tpu_custom_call.1} parent=43 // pred_check_branch
          %253 = sbr.rel (%p251) target = $region48
        $region47: #{tpu_custom_call.1} parent=43 // pred_region
          %255 = dma.done %s247, 256
        $region48: #{tpu_custom_call.1} parent=43 // pred_fallthru
          _
        // Predicated region
        $region49: #{tpu_custom_call.1} parent=43 // pred_check
          %p256 = pneg %p150
        $region50: #{tpu_custom_call.1} parent=43 // pred_check_branch
          %258 = sbr.rel (%p256) target = $region52
        $region51: #{tpu_custom_call.1} parent=43 // pred_region
          %260 = dma.done [#allocation7], 64
        $region52: #{tpu_custom_call.1} parent=43 // pred_fallthru
          _
        %s261 = sand.u32 %s32, 1
        %s262 = scalar_lea.sflag [#allocation4], %s261
        %s263 = sand.u32 %s32, 1
        %s264 = smul.addr %s263, 16
        %s265 = scalar_lea.vmem [#allocation3], %s264
        %p266 = pneg %p45
        %p267 = pneg %p42
        %p268 = pneg %p66
        %p269 = pneg %p63
        %p270 = pneg %p87
        %p271 = pneg %p84
        %p272 = pneg %p108
        %p273 = pneg %p105
        %p274 = pneg %p129
        %p275 = pneg %p126
        %p276 = pneg %p150
        %p277 = pneg %p147
        %p278 = pneg %p176
        %p279 = pneg %p173
        %s280 = sand.u32 %s163, 1
        %s281 = scalar_lea.sflag [#allocation5], %s280
        %s282 = sand.u32 %s163, 1
        %s283 = smul.addr %s282, 16
        %s284 = scalar_lea.vmem [#allocation8], %s283
        %285 = vst [vmem:[#allocation2] sm:$0xff] 0.0
        %286 = vst [vmem:[#allocation2 + $0x18] sm:$0xff] 0.0
        %v287 = vld [vmem:[#allocation6] ss:$2 sm:$0x3]
        %s288 = scalar_lea.vmem [#allocation6], 1
        %v289 = vld [vmem:[%s288] ss:$2 sm:$0x3]
        %v290 = vld [vmem:[%s250] sm:$0xff]
        %v291 = vld [vmem:[%s250 + $0x8] sm:$0xff]
        %292 = vst [vmem:[#allocation2 + $0x8] sm:$0xff] %v290
        %293 = vst [vmem:[#allocation2 + $0x10] sm:$0xff] %v291
        %v294 = vld [vmem:[#allocation2] sm:$0xff]
        %v295 = vld [vmem:[#allocation2 + $0x8] sm:$0xff]
        %v296 = vld [vmem:[#allocation2 + $0x10] sm:$0xff]
        %v298 = vperm.slane %v287, 0
        %v299 = vperm.slane %v287, 1
        %300 = vrot.lane.b32.xlu0 %v298, 111
        %v301 = vpop.permute.xlu0 %300
        %302 = vrot.lane.b32.xlu0 %v299, 111
        %v303 = vpop.permute.xlu0 %302
        %vm304 = vcmask 908288
        %v305 = vsel %vm304, %v301, %v303
        %v309 = vmul.f32 %v294, %v301
        %v310 = vmul.f32 %v295, %v305
        %v311 = vmul.f32 %v296, %v303
        %v313 = vperm.slane %v289, 0
        %v314 = vperm.slane %v289, 1
        %315 = vrot.lane.b32.xlu0 %v313, 113
        %v316 = vpop.permute.xlu0 %315
        %317 = vrot.lane.b32.xlu0 %v314, 113
        %v318 = vpop.permute.xlu0 %317
        %vm319 = vcmask 924672
        %v320 = vsel %vm319, %v316, %v318
        %v324 = vmul.f32 %v294, %v316
        %v325 = vmul.f32 %v295, %v320
        %v326 = vmul.f32 %v296, %v318
        %327 = vrot.lane.b32.xlu0 %v298, 127
        %v328 = vpop.permute.xlu0 %327
        %329 = vrot.lane.b32.xlu0 %v299, 127
        %v330 = vpop.permute.xlu0 %329
        %vm331 = vcmask 1039360
        %v332 = vsel %vm331, %v328, %v330
        %v336 = vmul.f32 %v294, %v328
        %v337 = vmul.f32 %v295, %v332
        %v338 = vmul.f32 %v296, %v330
        %v339 = vld [vmem:[#allocation2 + $0x8] sm:$0xff]
        %v340 = vld [vmem:[#allocation2 + $0x10] sm:$0xff]
        %v341 = vld [vmem:[#allocation2 + $0x18] sm:$0xff]
        %342 = vrot.lane.b32.xlu0 %v313, 1
        %v343 = vpop.permute.xlu0 %342
        %344 = vrot.lane.b32.xlu0 %v314, 1
        %v345 = vpop.permute.xlu0 %344
        %vm346 = vcmask 7168
        %v347 = vsel %vm346, %v343, %v345
        %v351 = vmul.f32 %v339, %v343
        %v352 = vmul.f32 %v340, %v347
        %v353 = vmul.f32 %v341, %v345
        %354 = vrot.lane.b32.xlu0 %v298, 15
        %v355 = vpop.permute.xlu0 %354
        %356 = vrot.lane.b32.xlu0 %v299, 15
        %v357 = vpop.permute.xlu0 %356
        %vm358 = vcmask 121856
        %v359 = vsel %vm358, %v355, %v357
        %v363 = vmul.f32 %v339, %v355
        %v364 = vmul.f32 %v340, %v359
        %v365 = vmul.f32 %v341, %v357
        %366 = vrot.lane.b32.xlu0 %v313, 17
        %v367 = vpop.permute.xlu0 %366
        %368 = vrot.lane.b32.xlu0 %v314, 17
        %v369 = vpop.permute.xlu0 %368
        %vm370 = vcmask 138240
        %v371 = vsel %vm370, %v367, %v369
        %v375 = vmul.f32 %v339, %v367
        %v376 = vmul.f32 %v340, %v371
        %v377 = vmul.f32 %v341, %v369
        %381 = vrot.lane.b32.xlu0 %v294, 127
        %v382 = vpop.permute.xlu0 %381
        %383 = vrot.lane.b32.xlu0 %v295, 127
        %v384 = vpop.permute.xlu0 %383
        %385 = vrot.lane.b32.xlu0 %v296, 127
        %v386 = vpop.permute.xlu0 %385
        %v387 = vsel %vm331, %v382, %v384
        %v388 = vsel %vm331, %v384, %v386
        %392 = vrot.lane.b32.xlu0 %v324, 126
        %v393 = vpop.permute.xlu0 %392
        %394 = vrot.lane.b32.xlu0 %v325, 126
        %v395 = vpop.permute.xlu0 %394
        %396 = vrot.lane.b32.xlu0 %v326, 126
        %v397 = vpop.permute.xlu0 %396
        %vm398 = vcmask 1031168
        %v399 = vsel %vm398, %v393, %v395
        %v400 = vsel %vm398, %v395, %v397
        %404 = vrot.lane.b32.xlu0 %v336, 112
        %v405 = vpop.permute.xlu0 %404
        %406 = vrot.lane.b32.xlu0 %v337, 112
        %v407 = vpop.permute.xlu0 %406
        %408 = vrot.lane.b32.xlu0 %v338, 112
        %v409 = vpop.permute.xlu0 %408
        %vm410 = vcmask 916480
        %v411 = vsel %vm410, %v405, %v407
        %v412 = vsel %vm410, %v407, %v409
        %413 = vrot.lane.b32.xlu0 %v295, 111
        %v414 = vpop.permute.xlu0 %413
        %415 = vrot.lane.b32.xlu0 %v296, 111
        %v416 = vpop.permute.xlu0 %415
        %v417 = vsel %vm304, %v414, %v416
        %421 = vrot.lane.b32.xlu0 %v351, 110
        %v422 = vpop.permute.xlu0 %421
        %423 = vrot.lane.b32.xlu0 %v352, 110
        %v424 = vpop.permute.xlu0 %423
        %425 = vrot.lane.b32.xlu0 %v353, 110
        %v426 = vpop.permute.xlu0 %425
        %vm427 = vcmask 900096
        %v428 = vsel %vm427, %v422, %v424
        %v429 = vsel %vm427, %v424, %v426
        %433 = vrot.lane.b32.xlu0 %v363, 96
        %v434 = vpop.permute.xlu0 %433
        %435 = vrot.lane.b32.xlu0 %v364, 96
        %v436 = vpop.permute.xlu0 %435
        %437 = vrot.lane.b32.xlu0 %v365, 96
        %v438 = vpop.permute.xlu0 %437
        %vm439 = vcmask 785408
        %v440 = vsel %vm439, %v434, %v436
        %v441 = vsel %vm439, %v436, %v438
        %445 = vrot.lane.b32.xlu0 %v339, 95
        %v446 = vpop.permute.xlu0 %445
        %447 = vrot.lane.b32.xlu0 %v340, 95
        %v448 = vpop.permute.xlu0 %447
        %449 = vrot.lane.b32.xlu0 %v341, 95
        %v450 = vpop.permute.xlu0 %449
        %vm451 = vcmask 777216
        %v452 = vsel %vm451, %v446, %v448
        %v453 = vsel %vm451, %v448, %v450
        %457 = vrot.lane.b32.xlu0 %v375, 94
        %v458 = vpop.permute.xlu0 %457
        %459 = vrot.lane.b32.xlu0 %v376, 94
        %v460 = vpop.permute.xlu0 %459
        %461 = vrot.lane.b32.xlu0 %v377, 94
        %v462 = vpop.permute.xlu0 %461
        %vm463 = vcmask 769024
        %v464 = vsel %vm463, %v458, %v460
        %v465 = vsel %vm463, %v460, %v462
        %v466 = vld [vmem:[%s1] sm:$0xff]
        %v467 = vld [vmem:[%s3] sm:$0xff]
        %469 = vset.pattern.permute.xlu0 0
        %470 = vperm.xlu0 %469, %v467
        %v471 = vpop.permute.xlu0 %470
        %476 = vrot.lane.b32.xlu0 %v309, 17
        %v477 = vpop.permute.xlu0 %476
        %478 = vrot.lane.b32.xlu0 %v310, 17
        %v479 = vpop.permute.xlu0 %478
        %480 = vrot.lane.b32.xlu0 %v311, 17
        %v481 = vpop.permute.xlu0 %480
        %482 = vrot.lane.b32.xlu0 %v387, 17
        %v483 = vpop.permute.xlu0 %482
        %484 = vrot.lane.b32.xlu0 %v388, 17
        %v485 = vpop.permute.xlu0 %484
        %486 = vrot.lane.b32.xlu0 %v386, 17
        %v487 = vpop.permute.xlu0 %486
        %488 = vrot.lane.b32.xlu0 %v399, 17
        %v489 = vpop.permute.xlu0 %488
        %490 = vrot.lane.b32.xlu0 %v400, 17
        %v491 = vpop.permute.xlu0 %490
        %492 = vrot.lane.b32.xlu0 %v397, 17
        %v493 = vpop.permute.xlu0 %492
        %494 = vrot.lane.b32.xlu0 %v411, 17
        %v495 = vpop.permute.xlu0 %494
        %496 = vrot.lane.b32.xlu0 %v412, 17
        %v497 = vpop.permute.xlu0 %496
        %498 = vrot.lane.b32.xlu0 %v409, 17
        %v499 = vpop.permute.xlu0 %498
        %500 = vrot.lane.b32.xlu0 %v414, 17
        %v501 = vpop.permute.xlu0 %500
        %502 = vrot.lane.b32.xlu0 %v417, 17
        %v503 = vpop.permute.xlu0 %502
        %504 = vrot.lane.b32.xlu0 %v416, 17
        %v505 = vpop.permute.xlu0 %504
        %506 = vrot.lane.b32.xlu0 %v422, 17
        %v507 = vpop.permute.xlu0 %506
        %508 = vrot.lane.b32.xlu0 %v428, 17
        %v509 = vpop.permute.xlu0 %508
        %510 = vrot.lane.b32.xlu0 %v429, 17
        %v511 = vpop.permute.xlu0 %510
        %512 = vrot.lane.b32.xlu0 %v434, 17
        %v513 = vpop.permute.xlu0 %512
        %514 = vrot.lane.b32.xlu0 %v440, 17
        %v515 = vpop.permute.xlu0 %514
        %516 = vrot.lane.b32.xlu0 %v441, 17
        %v517 = vpop.permute.xlu0 %516
        %518 = vrot.lane.b32.xlu0 %v446, 17
        %v519 = vpop.permute.xlu0 %518
        %520 = vrot.lane.b32.xlu0 %v452, 17
        %v521 = vpop.permute.xlu0 %520
        %522 = vrot.lane.b32.xlu0 %v453, 17
        %v523 = vpop.permute.xlu0 %522
        %524 = vrot.lane.b32.xlu0 %v458, 17
        %v525 = vpop.permute.xlu0 %524
        %526 = vrot.lane.b32.xlu0 %v464, 17
        %v527 = vpop.permute.xlu0 %526
        %528 = vrot.lane.b32.xlu0 %v465, 17
        %v529 = vpop.permute.xlu0 %528
        %v530 = vsel %vm370, %v477, %v479
        %v531 = vsel %vm370, %v479, %v481
        %v532 = vsel %vm370, %v483, %v485
        %v533 = vsel %vm370, %v485, %v487
        %v534 = vsel %vm370, %v489, %v491
        %v535 = vsel %vm370, %v491, %v493
        %v536 = vsel %vm370, %v495, %v497
        %v537 = vsel %vm370, %v497, %v499
        %v538 = vsel %vm370, %v501, %v503
        %v539 = vsel %vm370, %v503, %v505
        %v540 = vsel %vm370, %v507, %v509
        %v541 = vsel %vm370, %v509, %v511
        %v542 = vsel %vm370, %v513, %v515
        %v543 = vsel %vm370, %v515, %v517
        %v544 = vsel %vm370, %v519, %v521
        %v545 = vsel %vm370, %v521, %v523
        %v546 = vsel %vm370, %v525, %v527
        %v547 = vsel %vm370, %v527, %v529
        %vm566 = vcmask 588800
        %v568 = vsel %vm566, %v466, 0
        %570 = vmatpush.msra.mxu0 0.0
        %571 = vmatpush.msra.mxu0 0.0
        %572 = vmatpush.msra.mxu0 0.0
        %573 = vmatpush.msra.mxu0 0.0
        %574 = vmatpush.msra.mxu0 0.0
        %575 = vmatpush.msra.mxu0 0.0
        %576 = vmatpush.msra.mxu0 0.0
        %577 = vmatpush.msra.mxu0 %v546
        %578 = vmatpush.msra.mxu0 %v544
        %579 = vmatpush.msra.mxu0 %v542
        %580 = vmatpush.msra.mxu0 %v540
        %581 = vmatpush.msra.mxu0 %v538
        %582 = vmatpush.msra.mxu0 %v536
        %583 = vmatpush.msra.mxu0 %v534
        %584 = vmatpush.msra.mxu0 %v532
        %585 = vmatpush.msra.mxu0 %v530
        %586 = vmatmul.f32.gmra.mxu0 %v568
        %v587 = vpop.f32.mrf.mxu0
        %v588 = vadd.f32 %v471, %v587
        %589 = vdwg.mxu0
        %590 = vmatpush.msra.mxu0 0.0
        %591 = vmatpush.msra.mxu0 0.0
        %592 = vmatpush.msra.mxu0 0.0
        %593 = vmatpush.msra.mxu0 0.0
        %594 = vmatpush.msra.mxu0 0.0
        %595 = vmatpush.msra.mxu0 0.0
        %596 = vmatpush.msra.mxu0 0.0
        %597 = vmatpush.msra.mxu0 %v547
        %598 = vmatpush.msra.mxu0 %v545
        %599 = vmatpush.msra.mxu0 %v543
        %600 = vmatpush.msra.mxu0 %v541
        %601 = vmatpush.msra.mxu0 %v539
        %602 = vmatpush.msra.mxu0 %v537
        %603 = vmatpush.msra.mxu0 %v535
        %604 = vmatpush.msra.mxu0 %v533
        %605 = vmatpush.msra.mxu0 %v531
        %606 = vmatmul.f32.gmra.mxu0 %v568
        %v607 = vpop.f32.mrf.mxu0
        %v608 = vadd.f32 %v471, %v607
        %609 = vdwg.mxu0
        %v610 = vmax.f32 %v588, 0.0
        %v611 = vmax.f32 %v608, 0.0
        %612 = vst [vmem:[#allocation2 + $0x8] sm:$0xff] %v610
        %613 = vst [vmem:[#allocation2 + $0x10] sm:$0xff] %v611
        %v614 = vld [vmem:[#allocation2] sm:$0xff]
        %v615 = vld [vmem:[#allocation2 + $0x8] sm:$0xff]
        %v616 = vld [vmem:[#allocation2 + $0x10] sm:$0xff]
        %v617 = vmul.f32 %v614, %v301
        %v618 = vmul.f32 %v615, %v305
        %v619 = vmul.f32 %v616, %v303
        %v620 = vmul.f32 %v614, %v316
        %v621 = vmul.f32 %v615, %v320
        %v622 = vmul.f32 %v616, %v318
        %v623 = vmul.f32 %v614, %v328
        %v624 = vmul.f32 %v615, %v332
        %v625 = vmul.f32 %v616, %v330
        %v626 = vld [vmem:[#allocation2 + $0x8] sm:$0xff]
        %v627 = vld [vmem:[#allocation2 + $0x10] sm:$0xff]
        %v628 = vld [vmem:[#allocation2 + $0x18] sm:$0xff]
        %v629 = vmul.f32 %v626, %v343
        %v630 = vmul.f32 %v627, %v347
        %v631 = vmul.f32 %v628, %v345
        %v632 = vmul.f32 %v626, %v355
        %v633 = vmul.f32 %v627, %v359
        %v634 = vmul.f32 %v628, %v357
        %v635 = vmul.f32 %v626, %v367
        %v636 = vmul.f32 %v627, %v371
        %v637 = vmul.f32 %v628, %v369
        %641 = vrot.lane.b32.xlu0 %v614, 127
        %v642 = vpop.permute.xlu0 %641
        %643 = vrot.lane.b32.xlu0 %v615, 127
        %v644 = vpop.permute.xlu0 %643
        %645 = vrot.lane.b32.xlu0 %v616, 127
        %v646 = vpop.permute.xlu0 %645
        %v647 = vsel %vm331, %v642, %v644
        %v648 = vsel %vm331, %v644, %v646
        %652 = vrot.lane.b32.xlu0 %v620, 126
        %v653 = vpop.permute.xlu0 %652
        %654 = vrot.lane.b32.xlu0 %v621, 126
        %v655 = vpop.permute.xlu0 %654
        %656 = vrot.lane.b32.xlu0 %v622, 126
        %v657 = vpop.permute.xlu0 %656
        %v658 = vsel %vm398, %v653, %v655
        %v659 = vsel %vm398, %v655, %v657
        %663 = vrot.lane.b32.xlu0 %v623, 112
        %v664 = vpop.permute.xlu0 %663
        %665 = vrot.lane.b32.xlu0 %v624, 112
        %v666 = vpop.permute.xlu0 %665
        %667 = vrot.lane.b32.xlu0 %v625, 112
        %v668 = vpop.permute.xlu0 %667
        %v669 = vsel %vm410, %v664, %v666
        %v670 = vsel %vm410, %v666, %v668
        %671 = vrot.lane.b32.xlu0 %v615, 111
        %v672 = vpop.permute.xlu0 %671
        %673 = vrot.lane.b32.xlu0 %v616, 111
        %v674 = vpop.permute.xlu0 %673
        %v675 = vsel %vm304, %v672, %v674
        %679 = vrot.lane.b32.xlu0 %v629, 110
        %v680 = vpop.permute.xlu0 %679
        %681 = vrot.lane.b32.xlu0 %v630, 110
        %v682 = vpop.permute.xlu0 %681
        %683 = vrot.lane.b32.xlu0 %v631, 110
        %v684 = vpop.permute.xlu0 %683
        %v685 = vsel %vm427, %v680, %v682
        %v686 = vsel %vm427, %v682, %v684
        %690 = vrot.lane.b32.xlu0 %v632, 96
        %v691 = vpop.permute.xlu0 %690
        %692 = vrot.lane.b32.xlu0 %v633, 96
        %v693 = vpop.permute.xlu0 %692
        %694 = vrot.lane.b32.xlu0 %v634, 96
        %v695 = vpop.permute.xlu0 %694
        %v696 = vsel %vm439, %v691, %v693
        %v697 = vsel %vm439, %v693, %v695
        %701 = vrot.lane.b32.xlu0 %v626, 95
        %v702 = vpop.permute.xlu0 %701
        %703 = vrot.lane.b32.xlu0 %v627, 95
        %v704 = vpop.permute.xlu0 %703
        %705 = vrot.lane.b32.xlu0 %v628, 95
        %v706 = vpop.permute.xlu0 %705
        %v707 = vsel %vm451, %v702, %v704
        %v708 = vsel %vm451, %v704, %v706
        %712 = vrot.lane.b32.xlu0 %v635, 94
        %v713 = vpop.permute.xlu0 %712
        %714 = vrot.lane.b32.xlu0 %v636, 94
        %v715 = vpop.permute.xlu0 %714
        %716 = vrot.lane.b32.xlu0 %v637, 94
        %v717 = vpop.permute.xlu0 %716
        %v718 = vsel %vm463, %v713, %v715
        %v719 = vsel %vm463, %v715, %v717
        %v720 = vld [vmem:[%s2] sm:$0xff]
        %v721 = vld [vmem:[%s4] sm:$0xff]
        %723 = vset.pattern.permute.xlu0 0
        %724 = vperm.xlu0 %723, %v721
        %v725 = vpop.permute.xlu0 %724
        %730 = vrot.lane.b32.xlu0 %v617, 17
        %v731 = vpop.permute.xlu0 %730
        %732 = vrot.lane.b32.xlu0 %v618, 17
        %v733 = vpop.permute.xlu0 %732
        %734 = vrot.lane.b32.xlu0 %v619, 17
        %v735 = vpop.permute.xlu0 %734
        %736 = vrot.lane.b32.xlu0 %v647, 17
        %v737 = vpop.permute.xlu0 %736
        %738 = vrot.lane.b32.xlu0 %v648, 17
        %v739 = vpop.permute.xlu0 %738
        %740 = vrot.lane.b32.xlu0 %v646, 17
        %v741 = vpop.permute.xlu0 %740
        %742 = vrot.lane.b32.xlu0 %v658, 17
        %v743 = vpop.permute.xlu0 %742
        %744 = vrot.lane.b32.xlu0 %v659, 17
        %v745 = vpop.permute.xlu0 %744
        %746 = vrot.lane.b32.xlu0 %v657, 17
        %v747 = vpop.permute.xlu0 %746
        %748 = vrot.lane.b32.xlu0 %v669, 17
        %v749 = vpop.permute.xlu0 %748
        %750 = vrot.lane.b32.xlu0 %v670, 17
        %v751 = vpop.permute.xlu0 %750
        %752 = vrot.lane.b32.xlu0 %v668, 17
        %v753 = vpop.permute.xlu0 %752
        %754 = vrot.lane.b32.xlu0 %v672, 17
        %v755 = vpop.permute.xlu0 %754
        %756 = vrot.lane.b32.xlu0 %v675, 17
        %v757 = vpop.permute.xlu0 %756
        %758 = vrot.lane.b32.xlu0 %v674, 17
        %v759 = vpop.permute.xlu0 %758
        %760 = vrot.lane.b32.xlu0 %v680, 17
        %v761 = vpop.permute.xlu0 %760
        %762 = vrot.lane.b32.xlu0 %v685, 17
        %v763 = vpop.permute.xlu0 %762
        %764 = vrot.lane.b32.xlu0 %v686, 17
        %v765 = vpop.permute.xlu0 %764
        %766 = vrot.lane.b32.xlu0 %v691, 17
        %v767 = vpop.permute.xlu0 %766
        %768 = vrot.lane.b32.xlu0 %v696, 17
        %v769 = vpop.permute.xlu0 %768
        %770 = vrot.lane.b32.xlu0 %v697, 17
        %v771 = vpop.permute.xlu0 %770
        %772 = vrot.lane.b32.xlu0 %v702, 17
        %v773 = vpop.permute.xlu0 %772
        %774 = vrot.lane.b32.xlu0 %v707, 17
        %v775 = vpop.permute.xlu0 %774
        %776 = vrot.lane.b32.xlu0 %v708, 17
        %v777 = vpop.permute.xlu0 %776
        %778 = vrot.lane.b32.xlu0 %v713, 17
        %v779 = vpop.permute.xlu0 %778
        %780 = vrot.lane.b32.xlu0 %v718, 17
        %v781 = vpop.permute.xlu0 %780
        %782 = vrot.lane.b32.xlu0 %v719, 17
        %v783 = vpop.permute.xlu0 %782
        %v784 = vsel %vm370, %v731, %v733
        %v785 = vsel %vm370, %v733, %v735
        %v786 = vsel %vm370, %v737, %v739
        %v787 = vsel %vm370, %v739, %v741
        %v788 = vsel %vm370, %v743, %v745
        %v789 = vsel %vm370, %v745, %v747
        %v790 = vsel %vm370, %v749, %v751
        %v791 = vsel %vm370, %v751, %v753
        %v792 = vsel %vm370, %v755, %v757
        %v793 = vsel %vm370, %v757, %v759
        %v794 = vsel %vm370, %v761, %v763
        %v795 = vsel %vm370, %v763, %v765
        %v796 = vsel %vm370, %v767, %v769
        %v797 = vsel %vm370, %v769, %v771
        %v798 = vsel %vm370, %v773, %v775
        %v799 = vsel %vm370, %v775, %v777
        %v800 = vsel %vm370, %v779, %v781
        %v801 = vsel %vm370, %v781, %v783
        %v821 = vsel %vm566, %v720, 0
        %823 = vmatpush.msra.mxu0 0.0
        %824 = vmatpush.msra.mxu0 0.0
        %825 = vmatpush.msra.mxu0 0.0
        %826 = vmatpush.msra.mxu0 0.0
        %827 = vmatpush.msra.mxu0 0.0
        %828 = vmatpush.msra.mxu0 0.0
        %829 = vmatpush.msra.mxu0 0.0
        %830 = vmatpush.msra.mxu0 %v800
        %831 = vmatpush.msra.mxu0 %v798
        %832 = vmatpush.msra.mxu0 %v796
        %833 = vmatpush.msra.mxu0 %v794
        %834 = vmatpush.msra.mxu0 %v792
        %835 = vmatpush.msra.mxu0 %v790
        %836 = vmatpush.msra.mxu0 %v788
        %837 = vmatpush.msra.mxu0 %v786
        %838 = vmatpush.msra.mxu0 %v784
        %839 = vmatmul.f32.gmra.mxu0 %v821
        %v840 = vpop.f32.mrf.mxu0
        %v841 = vadd.f32 %v725, %v840
        %842 = vdwg.mxu0
        %843 = vmatpush.msra.mxu0 0.0
        %844 = vmatpush.msra.mxu0 0.0
        %845 = vmatpush.msra.mxu0 0.0
        %846 = vmatpush.msra.mxu0 0.0
        %847 = vmatpush.msra.mxu0 0.0
        %848 = vmatpush.msra.mxu0 0.0
        %849 = vmatpush.msra.mxu0 0.0
        %850 = vmatpush.msra.mxu0 %v801
        %851 = vmatpush.msra.mxu0 %v799
        %852 = vmatpush.msra.mxu0 %v797
        %853 = vmatpush.msra.mxu0 %v795
        %854 = vmatpush.msra.mxu0 %v793
        %855 = vmatpush.msra.mxu0 %v791
        %856 = vmatpush.msra.mxu0 %v789
        %857 = vmatpush.msra.mxu0 %v787
        %858 = vmatpush.msra.mxu0 %v785
        %859 = vmatmul.f32.gmra.mxu0 %v821
        %v860 = vpop.f32.mrf.mxu0
        %v861 = vadd.f32 %v725, %v860
        %862 = vdwg.mxu0
        %v863 = vadd.f32 %v841, %v290
        %v864 = vadd.f32 %v861, %v291
        %v865 = vmax.f32 %v863, 0.0
        %v866 = vmax.f32 %v864, 0.0
        %867 = vst [vmem:[%s284] sm:$0xff] %v865
        %868 = vst [vmem:[%s284 + $0x8] sm:$0xff] %v866
        %s869 = sand.u32 %s163, 1
        %s870 = scalar_lea.sflag [#allocation5], %s869
        %s871 = sand.u32 %s163, 1
        %s872 = smul.addr %s871, 16
        %s873 = scalar_lea.vmem [#allocation8], %s872
        // Predicated region
        $region53: #{tpu_custom_call.1} parent=43 // pred_check
          %p874 = pneg %p173
        $region54: #{tpu_custom_call.1} parent=43 // pred_check_branch
          %876 = sbr.rel (%p874) target = $region56
        $region55: #{tpu_custom_call.1} parent=43 // pred_region
          %878 = vsyncadd %s870, 0
          %s879 = smul.addr %s24, 2
          %s880 = smul.addr %s879, 8
          %s881 = scalar_lea.hbm %s6, %s880
          %s883 = sshll.u32 %s873, 4
          %s884 = int_to_ptr.vmem [resolvable:$true] %s883
          %s885 = sshll.u32 %s881, 4
          %s886 = int_to_ptr.hbm [resolvable:$true] %s885
          %888 = dma.vmem_to_hbm [thread:$0]  %s884, 256, %s886, %s870
        $region56: #{tpu_custom_call.1} parent=43 // pred_fallthru
          _
      $region44: #{tpu_custom_call.1} parent=5 // pred_fallthru
        _
      %p889 = scmp.le.s32.totalorder 2, %s19
      // Predicated region
      $region57: #{tpu_custom_call.1} parent=5 // pred_check
        %p890 = pneg %p889
      $region58: #{tpu_custom_call.1} parent=5 // pred_check_branch
        %892 = sbr.rel (%p890) target = $region60
      $region59: #{tpu_custom_call.1} parent=5 // pred_region
        %s893 = ssub.s32 %s19, 2
        // Predicated region
        $region61: #{tpu_custom_call.1} parent=59 // pred_check
          %p894 = pneg %p179
        $region62: #{tpu_custom_call.1} parent=59 // pred_check_branch
          %896 = sbr.rel (%p894) target = $region64
        $region63: #{tpu_custom_call.1} parent=59 // pred_region
          %s897 = sand.u32 %s164, 1
          %s898 = scalar_lea.sflag [#allocation5], %s897
          %s899 = sand.u32 %s164, 1
          %s900 = smul.addr %s899, 16
          %s901 = scalar_lea.vmem [#allocation8], %s900
          %903 = dma.done %s898, 256
        $region64: #{tpu_custom_call.1} parent=59 // pred_fallthru
          _
      $region60: #{tpu_custom_call.1} parent=5 // pred_fallthru
        _
    $region6: #{tpu_custom_call.1} parent=1 // loop_footer
      %s23 = sadd.s32 1, %s19
    $region7: #{tpu_custom_call.1} parent=1 // loop_footer_branch
      %18 = sbr.rel target = $region3
    $region8: #{tpu_custom_call.1} parent=1 // loop_exit
      _
    %904 = vsyncpa [#allocation4], 1
    %s905 = scalar_lea.sflag [#allocation4], 1
    %906 = vsyncpa %s905, 1
    %907 = vsyncpa [#allocation7], 1
    %908 = vsyncpa [#allocation5], 1
    %s909 = scalar_lea.sflag [#allocation5], 1
    %910 = vsyncpa %s909, 1

</llo_original>
